<compile_context>
chip_gen: v7x
topology: tpu7x:2x2x1
jax: 0.10.0
libtpu: 0.0.40
codegen_flags: <defaults>
</compile_context>

<pallas_src>
import functools

import jax
import jax.numpy as jnp
from jax.experimental import pallas as pl
from jax.experimental.pallas import tpu as pltpu

_LANES = 128  # vreg lane width; layer widths are padded to this


def _round_up(n, m):
    return ((n + m - 1) // m) * m


# ---------------------------------------------------------------------------
# Pallas kernel: fused MLP over one batch tile
# ---------------------------------------------------------------------------
def _mlp_kernel(n_hidden, x_ref, *refs):
    """refs = (w0, b0, ..., w_{n_hidden-1}, b_{n_hidden-1}, w_head, b_head, out_ref).

    Hidden weights are bf16 [in, out_padded]; biases f32 [1, out_padded].
    Head weight is an f32 row vector [1, unit_padded], head bias f32 [1, 1].
    Output ref is [tb, 1].
    """
    out_ref = refs[-1]
    param_refs = refs[:-1]

    h = x_ref[...].astype(jnp.bfloat16)
    for i in range(n_hidden):
        w = param_refs[2 * i][...]                      # bf16 [in, out]
        b = param_refs[2 * i + 1][...]                  # f32  [1, out]
        h = jnp.dot(h, w, preferred_element_type=jnp.float32) + b   # MXU, f32 acc
        h = jnp.maximum(h, 0.0)                         # ReLU on VPU
        if i < n_hidden - 1:
            h = h.astype(jnp.bfloat16)                  # feed next MXU matmul as bf16
        # Dropout between hidden layers is identity at inference time.

    # Head Linear(unit, 1): elementwise mul + lane reduction (VPU/XLU); padded
    # head-weight lanes are zero so they contribute nothing.
    w_head = param_refs[-2][...]                        # f32 [1, unit_padded]
    b_head = param_refs[-1][...]                        # f32 [1, 1]
    r = jnp.sum(h * w_head, axis=-1, keepdims=True) + b_head        # [tb, 1]
    out_ref[...] = r.astype(out_ref.dtype)


# ---------------------------------------------------------------------------
# One-time parameter preparation (hoisted out of the per-call path)
# ---------------------------------------------------------------------------
def prepare_params(params, *, lane_multiple=_LANES):
    """params: list of (W, b) in PyTorch layout (W: [out, in], b: [out]).

    Hidden output widths (and the matching K dims of downstream layers) are
    zero-padded up to a multiple of `lane_multiple` so every matmul uses
    full-lane vregs / full MXU columns.  Padded columns have zero weights and
    zero bias; ReLU keeps them exactly zero and the padded rows of the next
    weight are zero, so numerics match the unpadded network bit-for-bit up to
    the bf16 weight cast.  The input feature dim F is NOT padded (that would
    force an HBM copy of x).  Hidden weights are transposed to [in, out] and
    cast to bf16 once; biases and the head stay f32.
    """
    flat = []
    prev_pad = None  # padded width of previous layer output (None -> raw F)
    for w, b in params[:-1]:
        w = jnp.asarray(w, jnp.float32)
        b = jnp.asarray(b, jnp.float32)
        out_dim, in_dim = w.shape
        in_pad = in_dim if prev_pad is None else prev_pad
        out_pad = _round_up(out_dim, lane_multiple)
        w_p = jnp.zeros((in_pad, out_pad), jnp.float32).at[:in_dim, :out_dim].set(w.T)
        b_p = jnp.zeros((1, out_pad), jnp.float32).at[:, :out_dim].set(b.reshape(1, -1))
        flat.append(w_p.astype(jnp.bfloat16))           # [in_pad, out_pad]
        flat.append(b_p)                                 # [1, out_pad]
        prev_pad = out_pad

    w_head, b_head = params[-1]
    w_head = jnp.asarray(w_head, jnp.float32).reshape(1, -1)        # [1, unit]
    unit = w_head.shape[1]
    head_pad = prev_pad if prev_pad is not None else _round_up(unit, lane_multiple)
    w_head_p = jnp.zeros((1, head_pad), jnp.float32).at[:, :unit].set(w_head)
    flat.append(w_head_p)                                # [1, unit_padded]
    flat.append(jnp.asarray(b_head, jnp.float32).reshape(1, 1))     # [1, 1]
    return tuple(flat)


# ---------------------------------------------------------------------------
# VMEM budgeting helpers
# ---------------------------------------------------------------------------
def _vmem_capacity_bytes():
    try:
        return int(pltpu.get_tpu_info().vmem_capacity_bytes)
    except Exception:
        return 64 << 20  # conservative: v7x per-TC physical VMEM


def _default_block_batch():
    """Per-generation batch-tile default (review guidance)."""
    try:
        kind = jax.devices()[0].device_kind.lower()
    except Exception:
        return 256
    if "v5 lite" in kind or "v5e" in kind:
        return 128   # 4x128x128 MXU: 128 LHS rows already fill an MXU pass
    if "v6" in kind:
        return 512   # 128 MiB VMEM headroom; amortize per-grid-step overhead
    return 256       # v7x (64 MiB VMEM) and default


def _vmem_bytes(tb, F, prepared, n_hidden, weight_bufs):
    """Conservative resident-VMEM estimate for one batch tile."""
    params = weight_bufs * sum(p.size * p.dtype.itemsize for p in prepared)
    x_tiles = 2 * tb * F * 4                        # double-buffered input tile
    out_tiles = 2 * tb * 1 * 4                      # double-buffered output tile
    widths = [prepared[2 * i].shape[1] for i in range(n_hidden)]
    # bf16 copy of x + widest f32 activation + its bf16 copy (compiler scratch)
    act = tb * (2 * F + 6 * max(widths))
    return params + x_tiles + out_tiles + act


# ---------------------------------------------------------------------------
# Wrapper: batch-tiled pallas_call with resident (single-buffered) weights
# ---------------------------------------------------------------------------
def feedforward_net_pallas(x, prepared, *, block_batch=None):
    """x: [B, F] f32 (or bf16); prepared: output of prepare_params(). -> [B, 1] f32.

    Weights/biases use constant index_maps so they are DMA'd once and stay
    resident in VMEM while the batch grid software-pipelines x/out tiles.
    Feeding x as bf16 halves the dominant HBM read stream — only worthwhile if
    the f32->bf16 cast fuses into the producer upstream.
    """
    # TODO(synk): for configs whose first weight matrix alone approaches VMEM
    # capacity (wide hidden, large F on v7x), tile that layer's N dimension with
    # an extra "arbitrary" grid axis / pltpu.emit_pipeline instead of keeping
    # every weight resident.
    n_hidden = (len(prepared) - 2) // 2
    B, F = x.shape

    if block_batch is None:
        block_batch = _default_block_batch()

    # Batch tile: multiple of 8 (f32 sublane), never larger than B (ragged last
    # block is masked by Pallas; no wrapper-side pad copy of x).
    tb = min(block_batch, (B // 8) * 8) if B >= 8 else B

    # Shrink the tile until the (conservative, double-buffered-weight) VMEM
    # budget fits in ~3/4 of physical VMEM on this generation.
    vmem_cap = _vmem_capacity_bytes()
    vmem_target = min(vmem_cap, 128 << 20) * 3 // 4
    while tb > 8 and _vmem_bytes(tb, F, prepared, n_hidden, 2) > vmem_target:
        tb = max(8, (tb // 2) // 8 * 8)

    grid = (pl.cdiv(B, tb),)

    # Only raise the scoped-VMEM limit when the budget actually needs it
    # (16 MiB is the smallest default, on v5e); cap at physical capacity.
    budget = _vmem_bytes(tb, F, prepared, n_hidden, 2)
    vmem_limit = None
    if budget + budget // 4 > (16 << 20):
        vmem_limit = int(min(vmem_cap, budget + budget // 2))

    # Advisory cost estimate (narrow output, actual padded matmul dims).
    flops = 0
    d_in = F
    for idx in range(n_hidden):
        d_out = prepared[2 * idx].shape[1]
        flops += 2 * B * d_in * d_out
        d_in = d_out
    flops += 2 * B * d_in  # head reduction
    bytes_accessed = (B * F * x.dtype.itemsize
                      + B * 4
                      + sum(p.size * p.dtype.itemsize for p in prepared))

    out_shape = jax.ShapeDtypeStruct((B, 1), jnp.float32)
    out_specs = pl.BlockSpec((tb, 1), lambda i: (i, 0))
    x_spec = pl.BlockSpec((tb, F), lambda i: (i, 0))

    def _run(single_buffer_weights):
        in_specs = [x_spec]
        for p in prepared:
            if single_buffer_weights:
                # Constant index_map -> never re-fetched; one buffer is enough.
                spec = pl.BlockSpec(p.shape, lambda i: (0, 0),
                                    pipeline_mode=pl.Buffered(1))
            else:
                spec = pl.BlockSpec(p.shape, lambda i: (0, 0))
            in_specs.append(spec)
        return pl.pallas_call(
            functools.partial(_mlp_kernel, n_hidden),
            out_shape=out_shape,
            grid=grid,
            in_specs=in_specs,
            out_specs=out_specs,
            compiler_params=pltpu.CompilerParams(
                # Megacore sharding on v7x (needs >= 2 batch tiles to engage).
                dimension_semantics=("parallel",),
                vmem_limit_bytes=vmem_limit),
            cost_estimate=pl.CostEstimate(
                flops=flops, transcendentals=0, bytes_accessed=bytes_accessed),
        )(x, *prepared)

    try:
        return _run(single_buffer_weights=True)
    except Exception:
        # TODO(synk): this jax build rejects pl.Buffered(1) on resident inputs;
        # fall back to default double-buffered weights (2x weight VMEM).
        return _run(single_buffer_weights=False)


# ---------------------------------------------------------------------------
# Deterministic parameter construction (PyTorch-default-style uniform init)
# ---------------------------------------------------------------------------
def init_feedforward_params(key, input_size, n_layers, unit_size):
    """Builds the same layer stack as FeedForwardNet.__init__."""
    dims = [input_size, (2 ** (n_layers - 1)) * unit_size]
    for layer_idx in range(n_layers - 1, 0, -1):
        dims.append(unit_size * 2 ** (layer_idx - 1))
    dims.append(1)  # final Linear(unit_size, 1)

    params = []
    for fan_in, fan_out in zip(dims[:-1], dims[1:]):
        key, kw, kb = jax.random.split(key, 3)
        bound = 1.0 / (fan_in ** 0.5)
        w = jax.random.uniform(kw, (fan_out, fan_in), jnp.float32, -bound, bound)
        b = jax.random.uniform(kb, (fan_out,), jnp.float32, -bound, bound)
        params.append((w, b))
    return params


def feedforward_net_ref(x, params):
    """Pure-JAX f32 reference (eval mode: dropout = identity)."""
    h = x
    for i, (w, b) in enumerate(params):
        h = h @ w.T + b
        if i < len(params) - 1:
            h = jnp.maximum(h, 0.0)
    return h


if __name__ == "__main__":
    # Small shapes consistent with the module's forward: [B, input_size] in,
    # [B, 1] out.  n_layers=2 exercises the hidden stack (incl. dropout slot)
    # and unit_size=64 exercises the lane-padding of narrow tail layers.
    batch = 8
    input_size = 128
    unit_size = 64
    n_layers = 2

    key = jax.random.PRNGKey(0)
    kx, kp = jax.random.split(key)
    x = jax.random.normal(kx, (batch, input_size), jnp.float32)
    params = init_feedforward_params(kp, input_size, n_layers, unit_size)

    prepared = prepare_params(params)          # one-time transpose/pad/bf16 cast
    out = feedforward_net_pallas(x, prepared)
    out = jax.block_until_ready(out)

    ref = feedforward_net_ref(x, params)
    assert out.shape == (batch, 1), out.shape
    # bf16 weights with f32 accumulation -> loosened tolerance vs the f32 ref.
    assert jnp.allclose(out, ref, atol=2e-2, rtol=2e-2), "mismatch vs JAX reference"

    print("KERNEL_OK")
</pallas_src>

<mosaic_0001>
module attributes {stable_mosaic.version = 11 : i64} {
  func.func @_mlp_kernel(%arg0: i32, %arg1: memref<8x128xf32, #tpu.memory_space<vmem>>, %arg2: memref<128x128xbf16, #tpu.memory_space<vmem>>, %arg3: memref<1x128xf32, #tpu.memory_space<vmem>>, %arg4: memref<128x128xbf16, #tpu.memory_space<vmem>>, %arg5: memref<1x128xf32, #tpu.memory_space<vmem>>, %arg6: memref<1x128xf32, #tpu.memory_space<vmem>>, %arg7: memref<1x1xf32, #tpu.memory_space<vmem>>, %arg8: memref<8x1xf32, #tpu.memory_space<vmem>>) attributes {dimension_semantics = [#tpu.dimension_semantics<parallel>], iteration_bounds = array<i64: 1>, scalar_prefetch = 0 : i64, scratch_operands = 0 : i64, tpu.core_type = #tpu.core_type<tc>, window_params = [{transform_indices = @transform_0, window_bounds = array<i64: 8, 128>}, {pipeline_mode = #tpu.pipeline_mode<synchronous>, transform_indices = @transform_1, window_bounds = array<i64: 128, 128>}, {pipeline_mode = #tpu.pipeline_mode<synchronous>, transform_indices = @transform_2, window_bounds = array<i64: 1, 128>}, {pipeline_mode = #tpu.pipeline_mode<synchronous>, transform_indices = @transform_3, window_bounds = array<i64: 128, 128>}, {pipeline_mode = #tpu.pipeline_mode<synchronous>, transform_indices = @transform_4, window_bounds = array<i64: 1, 128>}, {pipeline_mode = #tpu.pipeline_mode<synchronous>, transform_indices = @transform_5, window_bounds = array<i64: 1, 128>}, {pipeline_mode = #tpu.pipeline_mode<synchronous>, transform_indices = @transform_6, window_bounds = array<i64: 1, 1>}, {transform_indices = @transform_7, window_bounds = array<i64: 8, 1>}]} {
    %c0 = arith.constant 0 : index
    %c0_0 = arith.constant 0 : index
    %0 = vector.load %arg1[%c0, %c0_0] : memref<8x128xf32, #tpu.memory_space<vmem>>, vector<8x128xf32>
    %1 = arith.truncf %0 : vector<8x128xf32> to vector<8x128xbf16>
    %c0_1 = arith.constant 0 : index
    %c0_2 = arith.constant 0 : index
    %2 = vector.load %arg2[%c0_1, %c0_2] : memref<128x128xbf16, #tpu.memory_space<vmem>>, vector<128x128xbf16>
    %c0_3 = arith.constant 0 : index
    %c0_4 = arith.constant 0 : index
    %3 = vector.load %arg3[%c0_3, %c0_4] : memref<1x128xf32, #tpu.memory_space<vmem>>, vector<1x128xf32>
    %cst = arith.constant dense<0.000000e+00> : vector<8x128xf32>
    %4 = tpu.matmul %1, %2, %cst {dimension_numbers = #tpu.dot_dimension_numbers<[1], [0], [0], [1], [0, 0, 1, 1], [], []>} : vector<8x128xbf16>, vector<128x128xbf16>, vector<8x128xf32> -> vector<8x128xf32>
    %5 = vector.broadcast %3 : vector<1x128xf32> to vector<8x128xf32>
    %6 = arith.addf %4, %5 : vector<8x128xf32>
    %cst_5 = arith.constant 0.000000e+00 : f32
    %7 = vector.broadcast %cst_5 : f32 to vector<8x128xf32>
    %8 = arith.maximumf %6, %7 : vector<8x128xf32>
    %9 = arith.truncf %8 : vector<8x128xf32> to vector<8x128xbf16>
    %c0_6 = arith.constant 0 : index
    %c0_7 = arith.constant 0 : index
    %10 = vector.load %arg4[%c0_6, %c0_7] : memref<128x128xbf16, #tpu.memory_space<vmem>>, vector<128x128xbf16>
    %c0_8 = arith.constant 0 : index
    %c0_9 = arith.constant 0 : index
    %11 = vector.load %arg5[%c0_8, %c0_9] : memref<1x128xf32, #tpu.memory_space<vmem>>, vector<1x128xf32>
    %cst_10 = arith.constant dense<0.000000e+00> : vector<8x128xf32>
    %12 = tpu.matmul %9, %10, %cst_10 {dimension_numbers = #tpu.dot_dimension_numbers<[1], [0], [0], [1], [0, 0, 1, 1], [], []>} : vector<8x128xbf16>, vector<128x128xbf16>, vector<8x128xf32> -> vector<8x128xf32>
    %13 = vector.broadcast %11 : vector<1x128xf32> to vector<8x128xf32>
    %14 = arith.addf %12, %13 : vector<8x128xf32>
    %cst_11 = arith.constant 0.000000e+00 : f32
    %15 = vector.broadcast %cst_11 : f32 to vector<8x128xf32>
    %16 = arith.maximumf %14, %15 : vector<8x128xf32>
    %c0_12 = arith.constant 0 : index
    %c0_13 = arith.constant 0 : index
    %17 = vector.load %arg6[%c0_12, %c0_13] : memref<1x128xf32, #tpu.memory_space<vmem>>, vector<1x128xf32>
    %c0_14 = arith.constant 0 : index
    %c0_15 = arith.constant 0 : index
    %18 = vector.load %arg7[%c0_14, %c0_15] : memref<1x1xf32, #tpu.memory_space<vmem>>, vector<1x1xf32>
    %19 = vector.broadcast %17 : vector<1x128xf32> to vector<8x128xf32>
    %20 = arith.mulf %16, %19 : vector<8x128xf32>
    %cst_16 = arith.constant dense<0.000000e+00> : vector<8xf32>
    %21 = vector.multi_reduction <add>, %20, %cst_16 [1] : vector<8x128xf32> to vector<8xf32>
    %22 = vector.shape_cast %21 : vector<8xf32> to vector<8x1xf32>
    %23 = vector.broadcast %18 : vector<1x1xf32> to vector<8x1xf32>
    %24 = arith.addf %22, %23 : vector<8x1xf32>
    %c0_17 = arith.constant 0 : index
    %c0_18 = arith.constant 0 : index
    %25 = vector.load %arg8[%c0_17, %c0_18] : memref<8x1xf32, #tpu.memory_space<vmem>>, vector<8x1xf32>
    tpu.vector_store %arg8[%c0_17, %c0_18], %24 {strides = array<i32>} : memref<8x1xf32, #tpu.memory_space<vmem>>, vector<8x1xf32>,
    return
  }
  func.func @transform_0(%arg0: i32) -> (i32, i32) {
    %c0_i32 = arith.constant 0 : i32
    %c0_i32_0 = arith.constant 0 : i32
    return %arg0, %c0_i32 : i32, i32
  }
  func.func @transform_1(%arg0: i32) -> (i32, i32) {
    %c0_i32 = arith.constant 0 : i32
    %c0_i32_0 = arith.constant 0 : i32
    %c0_i32_1 = arith.constant 0 : i32
    return %c0_i32, %c0_i32_0 : i32, i32
  }
  func.func @transform_2(%arg0: i32) -> (i32, i32) {
    %c0_i32 = arith.constant 0 : i32
    %c0_i32_0 = arith.constant 0 : i32
    %c0_i32_1 = arith.constant 0 : i32
    return %c0_i32, %c0_i32_0 : i32, i32
  }
  func.func @transform_3(%arg0: i32) -> (i32, i32) {
    %c0_i32 = arith.constant 0 : i32
    %c0_i32_0 = arith.constant 0 : i32
    %c0_i32_1 = arith.constant 0 : i32
    return %c0_i32, %c0_i32_0 : i32, i32
  }
  func.func @transform_4(%arg0: i32) -> (i32, i32) {
    %c0_i32 = arith.constant 0 : i32
    %c0_i32_0 = arith.constant 0 : i32
    %c0_i32_1 = arith.constant 0 : i32
    return %c0_i32, %c0_i32_0 : i32, i32
  }
  func.func @transform_5(%arg0: i32) -> (i32, i32) {
    %c0_i32 = arith.constant 0 : i32
    %c0_i32_0 = arith.constant 0 : i32
    %c0_i32_1 = arith.constant 0 : i32
    return %c0_i32, %c0_i32_0 : i32, i32
  }
  func.func @transform_6(%arg0: i32) -> (i32, i32) {
    %c0_i32 = arith.constant 0 : i32
    %c0_i32_0 = arith.constant 0 : i32
    %c0_i32_1 = arith.constant 0 : i32
    return %c0_i32, %c0_i32_0 : i32, i32
  }
  func.func @transform_7(%arg0: i32) -> (i32, i32) {
    %c0_i32 = arith.constant 0 : i32
    %c0_i32_0 = arith.constant 0 : i32
    return %arg0, %c0_i32 : i32, i32
  }
}

module attributes {stable_mosaic.version = 11 : i64} {
  func.func @_mlp_kernel(%arg0: i32, %arg1: memref<8x128xf32, #tpu.memory_space<vmem>>, %arg2: memref<128x128xbf16, #tpu.memory_space<vmem>>, %arg3: memref<1x128xf32, #tpu.memory_space<vmem>>, %arg4: memref<128x128xbf16, #tpu.memory_space<vmem>>, %arg5: memref<1x128xf32, #tpu.memory_space<vmem>>, %arg6: memref<1x128xf32, #tpu.memory_space<vmem>>, %arg7: memref<1x1xf32, #tpu.memory_space<vmem>>, %arg8: memref<8x1xf32, #tpu.memory_space<vmem>>) attributes {dimension_semantics = [#tpu.dimension_semantics<parallel>], iteration_bounds = array<i64: 1>, scalar_prefetch = 0 : i64, scratch_operands = 0 : i64, tpu.core_type = #tpu.core_type<tc>, window_params = [{transform_indices = @transform_0, window_bounds = array<i64: 8, 128>}, {pipeline_mode = #tpu.pipeline_mode<synchronous>, transform_indices = @transform_1, window_bounds = array<i64: 128, 128>}, {pipeline_mode = #tpu.pipeline_mode<synchronous>, transform_indices = @transform_2, window_bounds = array<i64: 1, 128>}, {pipeline_mode = #tpu.pipeline_mode<synchronous>, transform_indices = @transform_3, window_bounds = array<i64: 128, 128>}, {pipeline_mode = #tpu.pipeline_mode<synchronous>, transform_indices = @transform_4, window_bounds = array<i64: 1, 128>}, {pipeline_mode = #tpu.pipeline_mode<synchronous>, transform_indices = @transform_5, window_bounds = array<i64: 1, 128>}, {pipeline_mode = #tpu.pipeline_mode<synchronous>, transform_indices = @transform_6, window_bounds = array<i64: 1, 1>}, {transform_indices = @transform_7, window_bounds = array<i64: 8, 1>}]} {
    %c0 = arith.constant 0 : index
    %c0_0 = arith.constant 0 : index
    %0 = vector.load %arg1[%c0, %c0_0] : memref<8x128xf32, #tpu.memory_space<vmem>>, vector<8x128xf32>
    %1 = arith.truncf %0 : vector<8x128xf32> to vector<8x128xbf16>
    %c0_1 = arith.constant 0 : index
    %c0_2 = arith.constant 0 : index
    %2 = vector.load %arg2[%c0_1, %c0_2] : memref<128x128xbf16, #tpu.memory_space<vmem>>, vector<128x128xbf16>
    %c0_3 = arith.constant 0 : index
    %c0_4 = arith.constant 0 : index
    %3 = vector.load %arg3[%c0_3, %c0_4] : memref<1x128xf32, #tpu.memory_space<vmem>>, vector<1x128xf32>
    %cst = arith.constant dense<0.000000e+00> : vector<8x128xf32>
    %4 = tpu.matmul %1, %2, %cst {dimension_numbers = #tpu.dot_dimension_numbers<[1], [0], [0], [1], [0, 0, 1, 1], [], []>} : vector<8x128xbf16>, vector<128x128xbf16>, vector<8x128xf32> -> vector<8x128xf32>
    %5 = vector.broadcast %3 : vector<1x128xf32> to vector<8x128xf32>
    %6 = arith.addf %4, %5 : vector<8x128xf32>
    %cst_5 = arith.constant 0.000000e+00 : f32
    %7 = vector.broadcast %cst_5 : f32 to vector<8x128xf32>
    %8 = arith.maximumf %6, %7 : vector<8x128xf32>
    %9 = arith.truncf %8 : vector<8x128xf32> to vector<8x128xbf16>
    %c0_6 = arith.constant 0 : index
    %c0_7 = arith.constant 0 : index
    %10 = vector.load %arg4[%c0_6, %c0_7] : memref<128x128xbf16, #tpu.memory_space<vmem>>, vector<128x128xbf16>
    %c0_8 = arith.constant 0 : index
    %c0_9 = arith.constant 0 : index
    %11 = vector.load %arg5[%c0_8, %c0_9] : memref<1x128xf32, #tpu.memory_space<vmem>>, vector<1x128xf32>
    %cst_10 = arith.constant dense<0.000000e+00> : vector<8x128xf32>
    %12 = tpu.matmul %9, %10, %cst_10 {dimension_numbers = #tpu.dot_dimension_numbers<[1], [0], [0], [1], [0, 0, 1, 1], [], []>} : vector<8x128xbf16>, vector<128x128xbf16>, vector<8x128xf32> -> vector<8x128xf32>
    %13 = vector.broadcast %11 : vector<1x128xf32> to vector<8x128xf32>
    %14 = arith.addf %12, %13 : vector<8x128xf32>
    %cst_11 = arith.constant 0.000000e+00 : f32
    %15 = vector.broadcast %cst_11 : f32 to vector<8x128xf32>
    %16 = arith.maximumf %14, %15 : vector<8x128xf32>
    %c0_12 = arith.constant 0 : index
    %c0_13 = arith.constant 0 : index
    %17 = vector.load %arg6[%c0_12, %c0_13] : memref<1x128xf32, #tpu.memory_space<vmem>>, vector<1x128xf32>
    %c0_14 = arith.constant 0 : index
    %c0_15 = arith.constant 0 : index
    %18 = vector.load %arg7[%c0_14, %c0_15] : memref<1x1xf32, #tpu.memory_space<vmem>>, vector<1x1xf32>
    %19 = vector.broadcast %17 : vector<1x128xf32> to vector<8x128xf32>
    %20 = arith.mulf %16, %19 : vector<8x128xf32>
    %cst_16 = arith.constant dense<0.000000e+00> : vector<8xf32>
    %21 = vector.multi_reduction <add>, %20, %cst_16 [1] : vector<8x128xf32> to vector<8xf32>
    %22 = vector.shape_cast %21 : vector<8xf32> to vector<8x1xf32>
    %23 = vector.broadcast %18 : vector<1x1xf32> to vector<8x1xf32>
    %24 = arith.addf %22, %23 : vector<8x1xf32>
    %c0_17 = arith.constant 0 : index
    %c0_18 = arith.constant 0 : index
    %25 = vector.load %arg8[%c0_17, %c0_18] : memref<8x1xf32, #tpu.memory_space<vmem>>, vector<8x1xf32>
    tpu.vector_store %arg8[%c0_17, %c0_18], %24 {strides = array<i32>} : memref<8x1xf32, #tpu.memory_space<vmem>>, vector<8x1xf32>,
    return
  }
  func.func @transform_0(%arg0: i32) -> (i32, i32) {
    %c0_i32 = arith.constant 0 : i32
    %c0_i32_0 = arith.constant 0 : i32
    return %arg0, %c0_i32 : i32, i32
  }
  func.func @transform_1(%arg0: i32) -> (i32, i32) {
    %c0_i32 = arith.constant 0 : i32
    %c0_i32_0 = arith.constant 0 : i32
    %c0_i32_1 = arith.constant 0 : i32
    return %c0_i32, %c0_i32_0 : i32, i32
  }
  func.func @transform_2(%arg0: i32) -> (i32, i32) {
    %c0_i32 = arith.constant 0 : i32
    %c0_i32_0 = arith.constant 0 : i32
    %c0_i32_1 = arith.constant 0 : i32
    return %c0_i32, %c0_i32_0 : i32, i32
  }
  func.func @transform_3(%arg0: i32) -> (i32, i32) {
    %c0_i32 = arith.constant 0 : i32
    %c0_i32_0 = arith.constant 0 : i32
    %c0_i32_1 = arith.constant 0 : i32
    return %c0_i32, %c0_i32_0 : i32, i32
  }
  func.func @transform_4(%arg0: i32) -> (i32, i32) {
    %c0_i32 = arith.constant 0 : i32
    %c0_i32_0 = arith.constant 0 : i32
    %c0_i32_1 = arith.constant 0 : i32
    return %c0_i32, %c0_i32_0 : i32, i32
  }
  func.func @transform_5(%arg0: i32) -> (i32, i32) {
    %c0_i32 = arith.constant 0 : i32
    %c0_i32_0 = arith.constant 0 : i32
    %c0_i32_1 = arith.constant 0 : i32
    return %c0_i32, %c0_i32_0 : i32, i32
  }
  func.func @transform_6(%arg0: i32) -> (i32, i32) {
    %c0_i32 = arith.constant 0 : i32
    %c0_i32_0 = arith.constant 0 : i32
    %c0_i32_1 = arith.constant 0 : i32
    return %c0_i32, %c0_i32_0 : i32, i32
  }
  func.func @transform_7(%arg0: i32) -> (i32, i32) {
    %c0_i32 = arith.constant 0 : i32
    %c0_i32_0 = arith.constant 0 : i32
    return %arg0, %c0_i32 : i32, i32
  }
}

</mosaic_0001>

<llo_original>
// kernel: tpu_custom_call.1
$region0: #{tpu_custom_call.1}
  #allocation0 [shape = 'u32[]', space=smem, size = 0x4, offset = 0x4, fixed_abs, tag = 'smem constant byte address 0x4 - core index']
  #allocation1 [shape = 'u32[144,128]{1,0:T(1,128)}', space=vmem, size = 0x12000, scoped, tag = 'internal scratch']
  #allocation2 [shape = 'f32[1,1]{1,0:T(1,128)S(1)}', space=vmem, size = 0x200, scoped, tag = 'scoped memory for tpu_custom_call.1']
  %s0 = inlined_call_operand.hbm [shape: f32[8,128], index: 0, kind: input, shape index: {}]
  %s1 = inlined_call_operand.hbm [shape: bf16[128,128], index: 1, kind: input, shape index: {}]
  %s2 = inlined_call_operand.vmem [shape: f32[1,128], index: 2, kind: input, shape index: {}]
  %s3 = inlined_call_operand.hbm [shape: bf16[128,128], index: 3, kind: input, shape index: {}]
  %s4 = inlined_call_operand.vmem [shape: f32[1,128], index: 4, kind: input, shape index: {}]
  %s5 = inlined_call_operand.vmem [shape: f32[1,128], index: 5, kind: input, shape index: {}]
  %s6 = inlined_call_operand.<no memory space> [shape: f32[1,1], index: 6, kind: input, shape index: {}]
  %s7 = inlined_call_operand.vmem [shape: f32[8,1], index: 7, kind: output, shape index: {}]
  %s8 = sld [smem:[#allocation0]]
  $region50: #{tpu_custom_call.1} parent=0
    _
  %s10 = ssub.s32 1, %s8
  %s11 = scalar_select 0, %s10, %s8
  %v12 = vstv %s6
  %13 = vst [vmem:[#allocation2] sm:$0x1] %v12
  $region1: #{tpu_custom_call.1} parent=0
    #allocation3 [shape = 'u8[4096]{0}', space=vmem, size = 0x1000, scoped, tag = 'input window, operand 0, single buffered']
    #allocation4 [shape = 's32[1]{0}', space=sflag, size = 0x4, scoped, tag = 'scoped memory for tpu_custom_call.1']
    #allocation5 [shape = 'u8[32768]{0}', space=vmem, size = 0x8000, scoped, tag = 'input window, operand 1, single buffered']
    #allocation6 [shape = 's32[1]{0}', space=sflag, size = 0x4, scoped, tag = 'scoped memory for tpu_custom_call.1']
    #allocation7 [shape = 'u8[32768]{0}', space=vmem, size = 0x8000, scoped, tag = 'input window, operand 3, single buffered']
    %14 = vsyncpa [#allocation4], 0
    %15 = vsyncpa [#allocation6], 0
    // Predicated region
    $region2: #{tpu_custom_call.1} parent=1 // pred_check
      _
    $region3: #{tpu_custom_call.1} parent=1 // pred_check_branch
      %17 = sbr.rel (0) target = $region5
    $region4: #{tpu_custom_call.1} parent=1 // pred_region
      %s19 = ssub.s32 128, 128
      %20 = vsyncadd [#allocation4], %s19
      %s22 = sshll.u32 [#allocation3], 4
      %s23 = int_to_ptr.vmem [resolvable:$true] %s22
      %25 = dma.hbm_to_vmem [thread:$0]  %s0, 128, %s23, [#allocation4]
    $region5: #{tpu_custom_call.1} parent=1 // pred_fallthru
      _
    // Predicated region
    $region6: #{tpu_custom_call.1} parent=1 // pred_check
      _
    $region7: #{tpu_custom_call.1} parent=1 // pred_check_branch
      %27 = sbr.rel (0) target = $region9
    $region8: #{tpu_custom_call.1} parent=1 // pred_region
      %s29 = ssub.s32 1024, 1024
      %30 = vsyncadd [#allocation6], %s29
      %s31 = sshll.u32 [#allocation5], 4
      %s32 = int_to_ptr.vmem [resolvable:$true] %s31
      %37 = dma.hbm_to_vmem [thread:$0]  %s1, 1024, %s32, [#allocation6], 64, 64, 4
    $region9: #{tpu_custom_call.1} parent=1 // pred_fallthru
      _
    // Predicated region
    $region10: #{tpu_custom_call.1} parent=1 // pred_check
      _
    $region11: #{tpu_custom_call.1} parent=1 // pred_check_branch
      %39 = sbr.rel (0) target = $region13
    $region12: #{tpu_custom_call.1} parent=1 // pred_region
      _
    $region13: #{tpu_custom_call.1} parent=1 // pred_fallthru
      _
    // Predicated region
    $region14: #{tpu_custom_call.1} parent=1 // pred_check
      _
    $region15: #{tpu_custom_call.1} parent=1 // pred_check_branch
      %41 = sbr.rel (0) target = $region17
    $region16: #{tpu_custom_call.1} parent=1 // pred_region
      %s43 = ssub.s32 1024, 1024
      %44 = vsyncadd [#allocation6], %s43
      %s45 = sshll.u32 [#allocation7], 4
      %s46 = int_to_ptr.vmem [resolvable:$true] %s45
      %51 = dma.hbm_to_vmem [thread:$0]  %s3, 1024, %s46, [#allocation6], 64, 64, 4
    $region17: #{tpu_custom_call.1} parent=1 // pred_fallthru
      _
    // Predicated region
    $region18: #{tpu_custom_call.1} parent=1 // pred_check
      _
    $region19: #{tpu_custom_call.1} parent=1 // pred_check_branch
      %53 = sbr.rel (0) target = $region21
    $region20: #{tpu_custom_call.1} parent=1 // pred_region
      _
    $region21: #{tpu_custom_call.1} parent=1 // pred_fallthru
      _
    // Predicated region
    $region22: #{tpu_custom_call.1} parent=1 // pred_check
      _
    $region23: #{tpu_custom_call.1} parent=1 // pred_check_branch
      %55 = sbr.rel (0) target = $region25
    $region24: #{tpu_custom_call.1} parent=1 // pred_region
      _
    $region25: #{tpu_custom_call.1} parent=1 // pred_fallthru
      _
    // Predicated region
    $region26: #{tpu_custom_call.1} parent=1 // pred_check
      _
    $region27: #{tpu_custom_call.1} parent=1 // pred_check_branch
      %57 = sbr.rel (0) target = $region29
    $region28: #{tpu_custom_call.1} parent=1 // pred_region
      _
    $region29: #{tpu_custom_call.1} parent=1 // pred_fallthru
      _
    // Predicated region
    $region30: #{tpu_custom_call.1} parent=1 // pred_check
      _
    $region31: #{tpu_custom_call.1} parent=1 // pred_check_branch
      %59 = sbr.rel (0) target = $region33
    $region32: #{tpu_custom_call.1} parent=1 // pred_region
      %60 = dma.done [#allocation4], 128
    $region33: #{tpu_custom_call.1} parent=1 // pred_fallthru
      _
    // Predicated region
    $region34: #{tpu_custom_call.1} parent=1 // pred_check
      _
    $region35: #{tpu_custom_call.1} parent=1 // pred_check_branch
      %62 = sbr.rel (0) target = $region37
    $region36: #{tpu_custom_call.1} parent=1 // pred_region
      %63 = dma.done [#allocation6], 1024
    $region37: #{tpu_custom_call.1} parent=1 // pred_fallthru
      _
    // Predicated region
    $region38: #{tpu_custom_call.1} parent=1 // pred_check
      _
    $region39: #{tpu_custom_call.1} parent=1 // pred_check_branch
      %65 = sbr.rel (0) target = $region41
    $region40: #{tpu_custom_call.1} parent=1 // pred_region
      %66 = dma.done [#allocation6], 1024
    $region41: #{tpu_custom_call.1} parent=1 // pred_fallthru
      _
    %v68 = vld [vmem:[#allocation3] sm:$0xff]
    %v69 = vpack.c.bf16 %v68, %v68
    %v70 = vld [vmem:[#allocation5] sm:$0xf]
    %v71 = vld [vmem:[#allocation5 + $0x4] sm:$0xf]
    %v72 = vld [vmem:[#allocation5 + $0x8] sm:$0xf]
    %v73 = vld [vmem:[#allocation5 + $0xc] sm:$0xf]
    %v74 = vld [vmem:[#allocation5 + $0x10] sm:$0xf]
    %v75 = vld [vmem:[#allocation5 + $0x14] sm:$0xf]
    %v76 = vld [vmem:[#allocation5 + $0x18] sm:$0xf]
    %v77 = vld [vmem:[#allocation5 + $0x1c] sm:$0xf]
    %v78 = vld [vmem:[#allocation5 + $0x20] sm:$0xf]
    %v79 = vld [vmem:[#allocation5 + $0x24] sm:$0xf]
    %v80 = vld [vmem:[#allocation5 + $0x28] sm:$0xf]
    %v81 = vld [vmem:[#allocation5 + $0x2c] sm:$0xf]
    %v82 = vld [vmem:[#allocation5 + $0x30] sm:$0xf]
    %v83 = vld [vmem:[#allocation5 + $0x34] sm:$0xf]
    %v84 = vld [vmem:[#allocation5 + $0x38] sm:$0xf]
    %v85 = vld [vmem:[#allocation5 + $0x3c] sm:$0xf]
    %v86 = vld [vmem:[%s2] sm:$0x1]
    %v88 = vlaneseq
    %v89 = vshrl.u32 %v88, 7
    %v90 = vsub.s32 0, %v89
    %v91 = vrot.slane %v86, %v90
    %v109 = vunpack.c.l.b16 %v70
    %v110 = vunpack.c.l.b16 %v71
    %v111 = vunpack.c.l.b16 %v72
    %v112 = vunpack.c.l.b16 %v73
    %v113 = vunpack.c.l.b16 %v74
    %v114 = vunpack.c.l.b16 %v75
    %v115 = vunpack.c.l.b16 %v76
    %v116 = vunpack.c.l.b16 %v77
    %v117 = vunpack.c.l.b16 %v78
    %v118 = vunpack.c.l.b16 %v79
    %v119 = vunpack.c.l.b16 %v80
    %v120 = vunpack.c.l.b16 %v81
    %v121 = vunpack.c.l.b16 %v82
    %v122 = vunpack.c.l.b16 %v83
    %v123 = vunpack.c.l.b16 %v84
    %v124 = vunpack.c.l.b16 %v85
    %v125 = vpack.c.b16 %v110, %v109
    %v126 = vpack.c.b16 %v112, %v111
    %v127 = vpack.c.b16 %v114, %v113
    %v128 = vpack.c.b16 %v116, %v115
    %v129 = vpack.c.b16 %v118, %v117
    %v130 = vpack.c.b16 %v120, %v119
    %v131 = vpack.c.b16 %v122, %v121
    %v132 = vpack.c.b16 %v124, %v123
    %141 = vmatprep.subr.bf16.mxu0 0
    %142 = vmatpush1.bf16.msra.mxu0 %v125
    %143 = vmatprep.subr.bf16.mxu0 0
    %144 = vmatpush1.bf16.msra.mxu0 %v126
    %145 = vmatprep.subr.bf16.mxu0 0
    %146 = vmatpush1.bf16.msra.mxu0 %v127
    %147 = vmatprep.subr.bf16.mxu0 0
    %148 = vmatpush1.bf16.msra.mxu0 %v128
    %149 = vmatprep.subr.bf16.mxu0 0
    %150 = vmatpush1.bf16.msra.mxu0 %v129
    %151 = vmatprep.subr.bf16.mxu0 0
    %152 = vmatpush1.bf16.msra.mxu0 %v130
    %153 = vmatprep.subr.bf16.mxu0 0
    %154 = vmatpush1.bf16.msra.mxu0 %v131
    %155 = vmatprep.subr.bf16.mxu0 0
    %156 = vmatpush1.bf16.msra.mxu0 %v132
    %157 = vmatprep.subr.bf16.mxu0 0
    %158 = vmatpush1.bf16.msra.mxu0 0
    %159 = vmatprep.subr.bf16.mxu0 0
    %160 = vmatpush1.bf16.msra.mxu0 0
    %161 = vmatprep.subr.bf16.mxu0 0
    %162 = vmatpush1.bf16.msra.mxu0 0
    %163 = vmatprep.subr.bf16.mxu0 0
    %164 = vmatpush1.bf16.msra.mxu0 0
    %165 = vmatprep.subr.bf16.mxu0 0
    %166 = vmatpush1.bf16.msra.mxu0 0
    %167 = vmatprep.subr.bf16.mxu0 0
    %168 = vmatpush1.bf16.msra.mxu0 0
    %169 = vmatprep.subr.bf16.mxu0 0
    %170 = vmatpush1.bf16.msra.mxu0 0
    %171 = vmatprep.subr.bf16.mxu0 0
    %172 = vmatpush1.bf16.msra.mxu0 0
    %173 = vmatprep.mubr.bf16.mxu0 0
    %174 = vmatmul.mubr.bf16.gmra.mrb[0].mxu0 %v69
    %v175 = vpop.f32.mrb[0].mxu0
    %v176 = vadd.f32 %v91, %v175
    %v177 = vpop.f32.mrb[0].mxu0
    %v178 = vpop.f32.mrb[0].mxu0
    %v179 = vpop.f32.mrb[0].mxu0
    %180 = vdwg.mxu0
    %v181 = vmax.f32 %v176, 0.0
    %v182 = vpack.c.bf16 %v181, %v181
    %v183 = vld [vmem:[#allocation7] sm:$0xf]
    %v184 = vld [vmem:[#allocation7 + $0x4] sm:$0xf]
    %v185 = vld [vmem:[#allocation7 + $0x8] sm:$0xf]
    %v186 = vld [vmem:[#allocation7 + $0xc] sm:$0xf]
    %v187 = vld [vmem:[#allocation7 + $0x10] sm:$0xf]
    %v188 = vld [vmem:[#allocation7 + $0x14] sm:$0xf]
    %v189 = vld [vmem:[#allocation7 + $0x18] sm:$0xf]
    %v190 = vld [vmem:[#allocation7 + $0x1c] sm:$0xf]
    %v191 = vld [vmem:[#allocation7 + $0x20] sm:$0xf]
    %v192 = vld [vmem:[#allocation7 + $0x24] sm:$0xf]
    %v193 = vld [vmem:[#allocation7 + $0x28] sm:$0xf]
    %v194 = vld [vmem:[#allocation7 + $0x2c] sm:$0xf]
    %v195 = vld [vmem:[#allocation7 + $0x30] sm:$0xf]
    %v196 = vld [vmem:[#allocation7 + $0x34] sm:$0xf]
    %v197 = vld [vmem:[#allocation7 + $0x38] sm:$0xf]
    %v198 = vld [vmem:[#allocation7 + $0x3c] sm:$0xf]
    %v199 = vld [vmem:[%s4] sm:$0x1]
    %v201 = vlaneseq
    %v202 = vshrl.u32 %v201, 7
    %v203 = vsub.s32 0, %v202
    %v204 = vrot.slane %v199, %v203
    %v222 = vunpack.c.l.b16 %v183
    %v223 = vunpack.c.l.b16 %v184
    %v224 = vunpack.c.l.b16 %v185
    %v225 = vunpack.c.l.b16 %v186
    %v226 = vunpack.c.l.b16 %v187
    %v227 = vunpack.c.l.b16 %v188
    %v228 = vunpack.c.l.b16 %v189
    %v229 = vunpack.c.l.b16 %v190
    %v230 = vunpack.c.l.b16 %v191
    %v231 = vunpack.c.l.b16 %v192
    %v232 = vunpack.c.l.b16 %v193
    %v233 = vunpack.c.l.b16 %v194
    %v234 = vunpack.c.l.b16 %v195
    %v235 = vunpack.c.l.b16 %v196
    %v236 = vunpack.c.l.b16 %v197
    %v237 = vunpack.c.l.b16 %v198
    %v238 = vpack.c.b16 %v223, %v222
    %v239 = vpack.c.b16 %v225, %v224
    %v240 = vpack.c.b16 %v227, %v226
    %v241 = vpack.c.b16 %v229, %v228
    %v242 = vpack.c.b16 %v231, %v230
    %v243 = vpack.c.b16 %v233, %v232
    %v244 = vpack.c.b16 %v235, %v234
    %v245 = vpack.c.b16 %v237, %v236
    %254 = vmatprep.subr.bf16.mxu0 0
    %255 = vmatpush1.bf16.msra.mxu0 %v238
    %256 = vmatprep.subr.bf16.mxu0 0
    %257 = vmatpush1.bf16.msra.mxu0 %v239
    %258 = vmatprep.subr.bf16.mxu0 0
    %259 = vmatpush1.bf16.msra.mxu0 %v240
    %260 = vmatprep.subr.bf16.mxu0 0
    %261 = vmatpush1.bf16.msra.mxu0 %v241
    %262 = vmatprep.subr.bf16.mxu0 0
    %263 = vmatpush1.bf16.msra.mxu0 %v242
    %264 = vmatprep.subr.bf16.mxu0 0
    %265 = vmatpush1.bf16.msra.mxu0 %v243
    %266 = vmatprep.subr.bf16.mxu0 0
    %267 = vmatpush1.bf16.msra.mxu0 %v244
    %268 = vmatprep.subr.bf16.mxu0 0
    %269 = vmatpush1.bf16.msra.mxu0 %v245
    %270 = vmatprep.subr.bf16.mxu0 0
    %271 = vmatpush1.bf16.msra.mxu0 0
    %272 = vmatprep.subr.bf16.mxu0 0
    %273 = vmatpush1.bf16.msra.mxu0 0
    %274 = vmatprep.subr.bf16.mxu0 0
    %275 = vmatpush1.bf16.msra.mxu0 0
    %276 = vmatprep.subr.bf16.mxu0 0
    %277 = vmatpush1.bf16.msra.mxu0 0
    %278 = vmatprep.subr.bf16.mxu0 0
    %279 = vmatpush1.bf16.msra.mxu0 0
    %280 = vmatprep.subr.bf16.mxu0 0
    %281 = vmatpush1.bf16.msra.mxu0 0
    %282 = vmatprep.subr.bf16.mxu0 0
    %283 = vmatpush1.bf16.msra.mxu0 0
    %284 = vmatprep.subr.bf16.mxu0 0
    %285 = vmatpush1.bf16.msra.mxu0 0
    %286 = vmatprep.mubr.bf16.mxu0 0
    %287 = vmatmul.mubr.bf16.gmra.mrb[0].mxu0 %v182
    %v288 = vpop.f32.mrb[0].mxu0
    %v289 = vadd.f32 %v204, %v288
    %v290 = vpop.f32.mrb[0].mxu0
    %v291 = vpop.f32.mrb[0].mxu0
    %v292 = vpop.f32.mrb[0].mxu0
    %293 = vdwg.mxu0
    %v294 = vmax.f32 %v289, 0.0
    %v295 = vld [vmem:[%s5] sm:$0x1]
    %v296 = vld [vmem:[#allocation2] sm:$0x1]
    %v298 = vlaneseq
    %v299 = vshrl.u32 %v298, 7
    %v300 = vsub.s32 0, %v299
    %v301 = vrot.slane %v295, %v300
    %v303 = vmul.f32 %v294, %v301
    %304 = vadd.xlane.f32.xlu0 %v303
    %v305 = vpop.xlane.xlu0 %304
    %v307 = vlaneseq
    %v308 = vshrl.u32 %v307, 7
    %v309 = vsub.s32 0, %v308
    %v310 = vrot.slane %v296, %v309
    %v312 = vadd.f32 %v305, %v310
    %vm313 = vcmask 7168
    %314 = vst.msk [vmem:[%s7] sm:$0xff] %vm313, %v312
    // Predicated region
    $region42: #{tpu_custom_call.1} parent=1 // pred_check
      _
    $region43: #{tpu_custom_call.1} parent=1 // pred_check_branch
      %316 = sbr.rel (0) target = $region45
    $region44: #{tpu_custom_call.1} parent=1 // pred_region
      _
    $region45: #{tpu_custom_call.1} parent=1 // pred_fallthru
      _
    // Predicated region
    $region46: #{tpu_custom_call.1} parent=1 // pred_check
      _
    $region47: #{tpu_custom_call.1} parent=1 // pred_check_branch
      %318 = sbr.rel (0) target = $region49
    $region48: #{tpu_custom_call.1} parent=1 // pred_region
      _
    $region49: #{tpu_custom_call.1} parent=1 // pred_fallthru
      _
    %319 = vsyncpa [#allocation4], 1
    %320 = vsyncpa [#allocation6], 1

// kernel: tpu_custom_call.1
$region0: #{tpu_custom_call.1}
  #allocation0 [shape = 'u32[]', space=smem, size = 0x4, offset = 0x4, fixed_abs, tag = 'smem constant byte address 0x4 - core index']
  #allocation1 [shape = 'u32[144,128]{1,0:T(1,128)}', space=vmem, size = 0x12000, scoped, tag = 'internal scratch']
  #allocation2 [shape = 'f32[1,1]{1,0:T(1,128)S(1)}', space=vmem, size = 0x200, scoped, tag = 'scoped memory for tpu_custom_call.1']
  %s0 = inlined_call_operand.hbm [shape: f32[8,128], index: 0, kind: input, shape index: {}]
  %s1 = inlined_call_operand.hbm [shape: bf16[128,128], index: 1, kind: input, shape index: {}]
  %s2 = inlined_call_operand.vmem [shape: f32[1,128], index: 2, kind: input, shape index: {}]
  %s3 = inlined_call_operand.hbm [shape: bf16[128,128], index: 3, kind: input, shape index: {}]
  %s4 = inlined_call_operand.vmem [shape: f32[1,128], index: 4, kind: input, shape index: {}]
  %s5 = inlined_call_operand.vmem [shape: f32[1,128], index: 5, kind: input, shape index: {}]
  %s6 = inlined_call_operand.<no memory space> [shape: f32[1,1], index: 6, kind: input, shape index: {}]
  %s7 = inlined_call_operand.vmem [shape: f32[8,1], index: 7, kind: output, shape index: {}]
  %s8 = sld [smem:[#allocation0]]
  $region50: #{tpu_custom_call.1} parent=0
    _
  %s10 = ssub.s32 1, %s8
  %s11 = scalar_select 0, %s10, %s8
  %v12 = vstv %s6
  %13 = vst [vmem:[#allocation2] sm:$0x1] %v12
  $region1: #{tpu_custom_call.1} parent=0
    #allocation3 [shape = 'u8[4096]{0}', space=vmem, size = 0x1000, scoped, tag = 'input window, operand 0, single buffered']
    #allocation4 [shape = 's32[1]{0}', space=sflag, size = 0x4, scoped, tag = 'scoped memory for tpu_custom_call.1']
    #allocation5 [shape = 'u8[32768]{0}', space=vmem, size = 0x8000, scoped, tag = 'input window, operand 1, single buffered']
    #allocation6 [shape = 's32[1]{0}', space=sflag, size = 0x4, scoped, tag = 'scoped memory for tpu_custom_call.1']
    #allocation7 [shape = 'u8[32768]{0}', space=vmem, size = 0x8000, scoped, tag = 'input window, operand 3, single buffered']
    %14 = vsyncpa [#allocation4], 0
    %15 = vsyncpa [#allocation6], 0
    // Predicated region
    $region2: #{tpu_custom_call.1} parent=1 // pred_check
      _
    $region3: #{tpu_custom_call.1} parent=1 // pred_check_branch
      %17 = sbr.rel (0) target = $region5
    $region4: #{tpu_custom_call.1} parent=1 // pred_region
      %s19 = ssub.s32 128, 128
      %20 = vsyncadd [#allocation4], %s19
      %s22 = sshll.u32 [#allocation3], 4
      %s23 = int_to_ptr.vmem [resolvable:$true] %s22
      %25 = dma.hbm_to_vmem [thread:$0]  %s0, 128, %s23, [#allocation4]
    $region5: #{tpu_custom_call.1} parent=1 // pred_fallthru
      _
    // Predicated region
    $region6: #{tpu_custom_call.1} parent=1 // pred_check
      _
    $region7: #{tpu_custom_call.1} parent=1 // pred_check_branch
      %27 = sbr.rel (0) target = $region9
    $region8: #{tpu_custom_call.1} parent=1 // pred_region
      %s29 = ssub.s32 1024, 1024
      %30 = vsyncadd [#allocation6], %s29
      %s31 = sshll.u32 [#allocation5], 4
      %s32 = int_to_ptr.vmem [resolvable:$true] %s31
      %37 = dma.hbm_to_vmem [thread:$0]  %s1, 1024, %s32, [#allocation6], 64, 64, 4
    $region9: #{tpu_custom_call.1} parent=1 // pred_fallthru
      _
    // Predicated region
    $region10: #{tpu_custom_call.1} parent=1 // pred_check
      _
    $region11: #{tpu_custom_call.1} parent=1 // pred_check_branch
      %39 = sbr.rel (0) target = $region13
    $region12: #{tpu_custom_call.1} parent=1 // pred_region
      _
    $region13: #{tpu_custom_call.1} parent=1 // pred_fallthru
      _
    // Predicated region
    $region14: #{tpu_custom_call.1} parent=1 // pred_check
      _
    $region15: #{tpu_custom_call.1} parent=1 // pred_check_branch
      %41 = sbr.rel (0) target = $region17
    $region16: #{tpu_custom_call.1} parent=1 // pred_region
      %s43 = ssub.s32 1024, 1024
      %44 = vsyncadd [#allocation6], %s43
      %s45 = sshll.u32 [#allocation7], 4
      %s46 = int_to_ptr.vmem [resolvable:$true] %s45
      %51 = dma.hbm_to_vmem [thread:$0]  %s3, 1024, %s46, [#allocation6], 64, 64, 4
    $region17: #{tpu_custom_call.1} parent=1 // pred_fallthru
      _
    // Predicated region
    $region18: #{tpu_custom_call.1} parent=1 // pred_check
      _
    $region19: #{tpu_custom_call.1} parent=1 // pred_check_branch
      %53 = sbr.rel (0) target = $region21
    $region20: #{tpu_custom_call.1} parent=1 // pred_region
      _
    $region21: #{tpu_custom_call.1} parent=1 // pred_fallthru
      _
    // Predicated region
    $region22: #{tpu_custom_call.1} parent=1 // pred_check
      _
    $region23: #{tpu_custom_call.1} parent=1 // pred_check_branch
      %55 = sbr.rel (0) target = $region25
    $region24: #{tpu_custom_call.1} parent=1 // pred_region
      _
    $region25: #{tpu_custom_call.1} parent=1 // pred_fallthru
      _
    // Predicated region
    $region26: #{tpu_custom_call.1} parent=1 // pred_check
      _
    $region27: #{tpu_custom_call.1} parent=1 // pred_check_branch
      %57 = sbr.rel (0) target = $region29
    $region28: #{tpu_custom_call.1} parent=1 // pred_region
      _
    $region29: #{tpu_custom_call.1} parent=1 // pred_fallthru
      _
    // Predicated region
    $region30: #{tpu_custom_call.1} parent=1 // pred_check
      _
    $region31: #{tpu_custom_call.1} parent=1 // pred_check_branch
      %59 = sbr.rel (0) target = $region33
    $region32: #{tpu_custom_call.1} parent=1 // pred_region
      %60 = dma.done [#allocation4], 128
    $region33: #{tpu_custom_call.1} parent=1 // pred_fallthru
      _
    // Predicated region
    $region34: #{tpu_custom_call.1} parent=1 // pred_check
      _
    $region35: #{tpu_custom_call.1} parent=1 // pred_check_branch
      %62 = sbr.rel (0) target = $region37
    $region36: #{tpu_custom_call.1} parent=1 // pred_region
      %63 = dma.done [#allocation6], 1024
    $region37: #{tpu_custom_call.1} parent=1 // pred_fallthru
      _
    // Predicated region
    $region38: #{tpu_custom_call.1} parent=1 // pred_check
      _
    $region39: #{tpu_custom_call.1} parent=1 // pred_check_branch
      %65 = sbr.rel (0) target = $region41
    $region40: #{tpu_custom_call.1} parent=1 // pred_region
      %66 = dma.done [#allocation6], 1024
    $region41: #{tpu_custom_call.1} parent=1 // pred_fallthru
      _
    %v68 = vld [vmem:[#allocation3] sm:$0xff]
    %v69 = vpack.c.bf16 %v68, %v68
    %v70 = vld [vmem:[#allocation5] sm:$0xf]
    %v71 = vld [vmem:[#allocation5 + $0x4] sm:$0xf]
    %v72 = vld [vmem:[#allocation5 + $0x8] sm:$0xf]
    %v73 = vld [vmem:[#allocation5 + $0xc] sm:$0xf]
    %v74 = vld [vmem:[#allocation5 + $0x10] sm:$0xf]
    %v75 = vld [vmem:[#allocation5 + $0x14] sm:$0xf]
    %v76 = vld [vmem:[#allocation5 + $0x18] sm:$0xf]
    %v77 = vld [vmem:[#allocation5 + $0x1c] sm:$0xf]
    %v78 = vld [vmem:[#allocation5 + $0x20] sm:$0xf]
    %v79 = vld [vmem:[#allocation5 + $0x24] sm:$0xf]
    %v80 = vld [vmem:[#allocation5 + $0x28] sm:$0xf]
    %v81 = vld [vmem:[#allocation5 + $0x2c] sm:$0xf]
    %v82 = vld [vmem:[#allocation5 + $0x30] sm:$0xf]
    %v83 = vld [vmem:[#allocation5 + $0x34] sm:$0xf]
    %v84 = vld [vmem:[#allocation5 + $0x38] sm:$0xf]
    %v85 = vld [vmem:[#allocation5 + $0x3c] sm:$0xf]
    %v86 = vld [vmem:[%s2] sm:$0x1]
    %v88 = vlaneseq
    %v89 = vshrl.u32 %v88, 7
    %v90 = vsub.s32 0, %v89
    %v91 = vrot.slane %v86, %v90
    %v109 = vunpack.c.l.b16 %v70
    %v110 = vunpack.c.l.b16 %v71
    %v111 = vunpack.c.l.b16 %v72
    %v112 = vunpack.c.l.b16 %v73
    %v113 = vunpack.c.l.b16 %v74
    %v114 = vunpack.c.l.b16 %v75
    %v115 = vunpack.c.l.b16 %v76
    %v116 = vunpack.c.l.b16 %v77
    %v117 = vunpack.c.l.b16 %v78
    %v118 = vunpack.c.l.b16 %v79
    %v119 = vunpack.c.l.b16 %v80
    %v120 = vunpack.c.l.b16 %v81
    %v121 = vunpack.c.l.b16 %v82
    %v122 = vunpack.c.l.b16 %v83
    %v123 = vunpack.c.l.b16 %v84
    %v124 = vunpack.c.l.b16 %v85
    %v125 = vpack.c.b16 %v110, %v109
    %v126 = vpack.c.b16 %v112, %v111
    %v127 = vpack.c.b16 %v114, %v113
    %v128 = vpack.c.b16 %v116, %v115
    %v129 = vpack.c.b16 %v118, %v117
    %v130 = vpack.c.b16 %v120, %v119
    %v131 = vpack.c.b16 %v122, %v121
    %v132 = vpack.c.b16 %v124, %v123
    %141 = vmatprep.subr.bf16.mxu0 0
    %142 = vmatpush1.bf16.msra.mxu0 %v125
    %143 = vmatprep.subr.bf16.mxu0 0
    %144 = vmatpush1.bf16.msra.mxu0 %v126
    %145 = vmatprep.subr.bf16.mxu0 0
    %146 = vmatpush1.bf16.msra.mxu0 %v127
    %147 = vmatprep.subr.bf16.mxu0 0
    %148 = vmatpush1.bf16.msra.mxu0 %v128
    %149 = vmatprep.subr.bf16.mxu0 0
    %150 = vmatpush1.bf16.msra.mxu0 %v129
    %151 = vmatprep.subr.bf16.mxu0 0
    %152 = vmatpush1.bf16.msra.mxu0 %v130
    %153 = vmatprep.subr.bf16.mxu0 0
    %154 = vmatpush1.bf16.msra.mxu0 %v131
    %155 = vmatprep.subr.bf16.mxu0 0
    %156 = vmatpush1.bf16.msra.mxu0 %v132
    %157 = vmatprep.subr.bf16.mxu0 0
    %158 = vmatpush1.bf16.msra.mxu0 0
    %159 = vmatprep.subr.bf16.mxu0 0
    %160 = vmatpush1.bf16.msra.mxu0 0
    %161 = vmatprep.subr.bf16.mxu0 0
    %162 = vmatpush1.bf16.msra.mxu0 0
    %163 = vmatprep.subr.bf16.mxu0 0
    %164 = vmatpush1.bf16.msra.mxu0 0
    %165 = vmatprep.subr.bf16.mxu0 0
    %166 = vmatpush1.bf16.msra.mxu0 0
    %167 = vmatprep.subr.bf16.mxu0 0
    %168 = vmatpush1.bf16.msra.mxu0 0
    %169 = vmatprep.subr.bf16.mxu0 0
    %170 = vmatpush1.bf16.msra.mxu0 0
    %171 = vmatprep.subr.bf16.mxu0 0
    %172 = vmatpush1.bf16.msra.mxu0 0
    %173 = vmatprep.mubr.bf16.mxu0 0
    %174 = vmatmul.mubr.bf16.gmra.mrb[0].mxu0 %v69
    %v175 = vpop.f32.mrb[0].mxu0
    %v176 = vadd.f32 %v91, %v175
    %v177 = vpop.f32.mrb[0].mxu0
    %v178 = vpop.f32.mrb[0].mxu0
    %v179 = vpop.f32.mrb[0].mxu0
    %180 = vdwg.mxu0
    %v181 = vmax.f32 %v176, 0.0
    %v182 = vpack.c.bf16 %v181, %v181
    %v183 = vld [vmem:[#allocation7] sm:$0xf]
    %v184 = vld [vmem:[#allocation7 + $0x4] sm:$0xf]
    %v185 = vld [vmem:[#allocation7 + $0x8] sm:$0xf]
    %v186 = vld [vmem:[#allocation7 + $0xc] sm:$0xf]
    %v187 = vld [vmem:[#allocation7 + $0x10] sm:$0xf]
    %v188 = vld [vmem:[#allocation7 + $0x14] sm:$0xf]
    %v189 = vld [vmem:[#allocation7 + $0x18] sm:$0xf]
    %v190 = vld [vmem:[#allocation7 + $0x1c] sm:$0xf]
    %v191 = vld [vmem:[#allocation7 + $0x20] sm:$0xf]
    %v192 = vld [vmem:[#allocation7 + $0x24] sm:$0xf]
    %v193 = vld [vmem:[#allocation7 + $0x28] sm:$0xf]
    %v194 = vld [vmem:[#allocation7 + $0x2c] sm:$0xf]
    %v195 = vld [vmem:[#allocation7 + $0x30] sm:$0xf]
    %v196 = vld [vmem:[#allocation7 + $0x34] sm:$0xf]
    %v197 = vld [vmem:[#allocation7 + $0x38] sm:$0xf]
    %v198 = vld [vmem:[#allocation7 + $0x3c] sm:$0xf]
    %v199 = vld [vmem:[%s4] sm:$0x1]
    %v201 = vlaneseq
    %v202 = vshrl.u32 %v201, 7
    %v203 = vsub.s32 0, %v202
    %v204 = vrot.slane %v199, %v203
    %v222 = vunpack.c.l.b16 %v183
    %v223 = vunpack.c.l.b16 %v184
    %v224 = vunpack.c.l.b16 %v185
    %v225 = vunpack.c.l.b16 %v186
    %v226 = vunpack.c.l.b16 %v187
    %v227 = vunpack.c.l.b16 %v188
    %v228 = vunpack.c.l.b16 %v189
    %v229 = vunpack.c.l.b16 %v190
    %v230 = vunpack.c.l.b16 %v191
    %v231 = vunpack.c.l.b16 %v192
    %v232 = vunpack.c.l.b16 %v193
    %v233 = vunpack.c.l.b16 %v194
    %v234 = vunpack.c.l.b16 %v195
    %v235 = vunpack.c.l.b16 %v196
    %v236 = vunpack.c.l.b16 %v197
    %v237 = vunpack.c.l.b16 %v198
    %v238 = vpack.c.b16 %v223, %v222
    %v239 = vpack.c.b16 %v225, %v224
    %v240 = vpack.c.b16 %v227, %v226
    %v241 = vpack.c.b16 %v229, %v228
    %v242 = vpack.c.b16 %v231, %v230
    %v243 = vpack.c.b16 %v233, %v232
    %v244 = vpack.c.b16 %v235, %v234
    %v245 = vpack.c.b16 %v237, %v236
    %254 = vmatprep.subr.bf16.mxu0 0
    %255 = vmatpush1.bf16.msra.mxu0 %v238
    %256 = vmatprep.subr.bf16.mxu0 0
    %257 = vmatpush1.bf16.msra.mxu0 %v239
    %258 = vmatprep.subr.bf16.mxu0 0
    %259 = vmatpush1.bf16.msra.mxu0 %v240
    %260 = vmatprep.subr.bf16.mxu0 0
    %261 = vmatpush1.bf16.msra.mxu0 %v241
    %262 = vmatprep.subr.bf16.mxu0 0
    %263 = vmatpush1.bf16.msra.mxu0 %v242
    %264 = vmatprep.subr.bf16.mxu0 0
    %265 = vmatpush1.bf16.msra.mxu0 %v243
    %266 = vmatprep.subr.bf16.mxu0 0
    %267 = vmatpush1.bf16.msra.mxu0 %v244
    %268 = vmatprep.subr.bf16.mxu0 0
    %269 = vmatpush1.bf16.msra.mxu0 %v245
    %270 = vmatprep.subr.bf16.mxu0 0
    %271 = vmatpush1.bf16.msra.mxu0 0
    %272 = vmatprep.subr.bf16.mxu0 0
    %273 = vmatpush1.bf16.msra.mxu0 0
    %274 = vmatprep.subr.bf16.mxu0 0
    %275 = vmatpush1.bf16.msra.mxu0 0
    %276 = vmatprep.subr.bf16.mxu0 0
    %277 = vmatpush1.bf16.msra.mxu0 0
    %278 = vmatprep.subr.bf16.mxu0 0
    %279 = vmatpush1.bf16.msra.mxu0 0
    %280 = vmatprep.subr.bf16.mxu0 0
    %281 = vmatpush1.bf16.msra.mxu0 0
    %282 = vmatprep.subr.bf16.mxu0 0
    %283 = vmatpush1.bf16.msra.mxu0 0
    %284 = vmatprep.subr.bf16.mxu0 0
    %285 = vmatpush1.bf16.msra.mxu0 0
    %286 = vmatprep.mubr.bf16.mxu0 0
    %287 = vmatmul.mubr.bf16.gmra.mrb[0].mxu0 %v182
    %v288 = vpop.f32.mrb[0].mxu0
    %v289 = vadd.f32 %v204, %v288
    %v290 = vpop.f32.mrb[0].mxu0
    %v291 = vpop.f32.mrb[0].mxu0
    %v292 = vpop.f32.mrb[0].mxu0
    %293 = vdwg.mxu0
    %v294 = vmax.f32 %v289, 0.0
    %v295 = vld [vmem:[%s5] sm:$0x1]
    %v296 = vld [vmem:[#allocation2] sm:$0x1]
    %v298 = vlaneseq
    %v299 = vshrl.u32 %v298, 7
    %v300 = vsub.s32 0, %v299
    %v301 = vrot.slane %v295, %v300
    %v303 = vmul.f32 %v294, %v301
    %304 = vadd.xlane.f32.xlu0 %v303
    %v305 = vpop.xlane.xlu0 %304
    %v307 = vlaneseq
    %v308 = vshrl.u32 %v307, 7
    %v309 = vsub.s32 0, %v308
    %v310 = vrot.slane %v296, %v309
    %v312 = vadd.f32 %v305, %v310
    %vm313 = vcmask 7168
    %314 = vst.msk [vmem:[%s7] sm:$0xff] %vm313, %v312
    // Predicated region
    $region42: #{tpu_custom_call.1} parent=1 // pred_check
      _
    $region43: #{tpu_custom_call.1} parent=1 // pred_check_branch
      %316 = sbr.rel (0) target = $region45
    $region44: #{tpu_custom_call.1} parent=1 // pred_region
      _
    $region45: #{tpu_custom_call.1} parent=1 // pred_fallthru
      _
    // Predicated region
    $region46: #{tpu_custom_call.1} parent=1 // pred_check
      _
    $region47: #{tpu_custom_call.1} parent=1 // pred_check_branch
      %318 = sbr.rel (0) target = $region49
    $region48: #{tpu_custom_call.1} parent=1 // pred_region
      _
    $region49: #{tpu_custom_call.1} parent=1 // pred_fallthru
      _
    %319 = vsyncpa [#allocation4], 1
    %320 = vsyncpa [#allocation6], 1

</llo_original>
